<compile_context>
chip_gen: v7x
topology: tpu7x:2x2x1
jax: 0.10.0
libtpu: 0.0.40
codegen_flags: <defaults>
</compile_context>

<pallas_src>
import jax
import jax.numpy as jnp
from jax import lax
from jax.experimental import pallas as pl
from jax.experimental.pallas import tpu as pltpu


# ----------------------------- kernels ------------------------------------ #

def _pool_kernel_folded(x_ref, colpool_ref, o_ref):
    """Folded path.

    x_ref:       (1, IC, TH, k*W)  input tile, patch rows folded into lanes
    colpool_ref: (k*W, Wo)         0/1 pooling matrix (row+col pool in one)
    o_ref:       (1, OC, TH, Wo)   output tile (NCHW)
    """
    ic_n = x_ref.shape[1]
    ch = x_ref[0, 0].astype(jnp.float32)
    for ic in range(1, ic_n):                      # channel sum on the VPU
        ch = ch + x_ref[0, ic].astype(jnp.float32)              # (TH, k*W)
    patch = jnp.dot(ch, colpool_ref[...],
                    preferred_element_type=jnp.float32)          # (TH, Wo)
    patch = patch.astype(o_ref.dtype)
    # All-ones conv kernel => every output channel is the same patch sum.
    # Per-channel stores keep the live set at one (TH, Wo) tile.
    for oc in range(o_ref.shape[1]):
        o_ref[0, oc] = patch


def _pool_kernel_nchw(x_ref, rowpool_ref, colpool_ref, o_ref):
    """General NCHW path (used when H % k != 0 or W is very wide).

    x_ref:       (1, IC, TH*k, W)  input tile (original NCHW layout)
    rowpool_ref: (TH, TH*k)        0/1 row-group selection (applied post-colpool)
    colpool_ref: (W, Wo)           0/1 column pooling (zeros for cols >= Wo*k)
    o_ref:       (1, OC, TH, Wo)   output tile (NCHW)
    """
    ic_n = x_ref.shape[1]
    ch = x_ref[0, 0].astype(jnp.float32)
    for ic in range(1, ic_n):
        ch = ch + x_ref[0, ic].astype(jnp.float32)              # (TH*k, W)
    cols = jnp.dot(ch, colpool_ref[...],
                   preferred_element_type=jnp.float32)           # (TH*k, Wo)
    patch = jnp.dot(rowpool_ref[...], cols,
                    preferred_element_type=jnp.float32)          # (TH, Wo)
    patch = patch.astype(o_ref.dtype)
    for oc in range(o_ref.shape[1]):
        o_ref[0, oc] = patch
    # TODO(synk): replace the small post-colpool row-pool matmul with k strided
    # sublane reads (x_ref[..., pl.ds(di, TH, stride=k), :]) once strided ref
    # loads are validated on all target generations.


# --------------------------- tiling helpers -------------------------------- #

def _rup(v, m):
    return -(-v // m) * m


def _blk_bytes(dims, itemsize=4):
    """VMEM bytes of one block, accounting for (8, 128) physical padding."""
    dims = list(dims)
    if len(dims) >= 1:
        dims[-1] = _rup(dims[-1], 128)
    if len(dims) >= 2:
        dims[-2] = _rup(dims[-2], 8)
    n = 1
    for d in dims:
        n *= d
    return n * itemsize


def _pick_tile_h(Ho, is_valid, block_bytes, budget_bytes, batch, min_steps):
    """Largest row-tile TH that divides Ho, obeys the (8,128) block rule
    (via is_valid), fits the double-buffered VMEM budget, and still leaves at
    least `min_steps` grid steps (megacore / pipeline overlap)."""
    cands = [d for d in range(1, Ho + 1) if Ho % d == 0 and is_valid(d)]
    if not cands:
        return None
    fitting = [d for d in cands if block_bytes(d) <= budget_bytes]
    if not fitting:
        return min(cands)
    enough = [d for d in fitting if batch * (Ho // d) >= min_steps]
    return max(enough) if enough else min(fitting)


# ------------------------------ wrapper ------------------------------------ #

def ground_truth_process(x, out_channels, kernel_size):
    """Equivalent of GroundTruthProcess.forward:
    F.conv2d(x, ones(OC, IC, k, k), bias=None, stride=k, padding=0).

    x: (B, IC, H, W).  Returns (B, OC, H//k, W//k) in x.dtype.
    """
    B, IC, H, W = x.shape
    k = int(kernel_size)
    OC = int(out_channels)
    Ho, Wo = H // k, W // k
    out_dtype = x.dtype

    if Ho == 0 or Wo == 0:
        return jnp.zeros((B, OC, Ho, Wo), out_dtype)

    try:
        kind = jax.devices()[0].device_kind.lower()
    except Exception:
        kind = ""
    is_v7 = ("v7" in kind) or ("7x" in kind)
    # Double-buffered working-set budget per TensorCore (v7x: 64 MiB VMEM/TC).
    budget = (24 if is_v7 else 48) * 1024 * 1024
    base_vmem_limit = budget + (8 if is_v7 else 16) * 1024 * 1024
    # Enough grid steps so megacore (v7x: 2 TCs) + double-buffering overlap.
    min_steps = 4 if is_v7 else 2

    itemsize = jnp.dtype(out_dtype).itemsize
    kW = k * W

    col_ids = jnp.arange(W) // k
    # Columns >= Wo*k map to no output column -> exact F.conv2d truncation
    # without any wrapper slice/copy.
    colmask = col_ids[:, None] == jnp.arange(Wo)[None, :]          # (W, Wo)

    # Folded path usable when H % k == 0 (zero-copy reshape) and the folded
    # pooling constant stays small.
    use_folded = (H % k == 0) and (2 * _blk_bytes((kW, Wo), itemsize) <= budget // 4)

    TH = None
    path = None
    bytes_A = bytes_B = None

    if use_folded:
        def bytes_A(d):
            return 2 * (_blk_bytes((IC, d, kW), itemsize)
                        + _blk_bytes((kW, Wo), itemsize)
                        + _blk_bytes((OC, d, Wo), itemsize))
        TH = _pick_tile_h(Ho, lambda d: d % 8 == 0 or d == Ho,
                          bytes_A, budget, B, min_steps)
        path = "folded"

    if TH is None:
        def bytes_B(d):
            return 2 * (_blk_bytes((IC, d * k, W), itemsize)
                        + _blk_bytes((W, Wo), itemsize)
                        + _blk_bytes((d, d * k), itemsize)
                        + _blk_bytes((OC, d, Wo), itemsize))
        TH = _pick_tile_h(Ho, lambda d: (d * k) % 8 == 0 or d * k == H,
                          bytes_B, budget, B, min_steps)
        path = "nchw"

    if TH is None:
        # Last resort (no legal NCHW row tile, e.g. awkward odd k): truncate
        # rows once (copy) and run the folded path with TH == Ho.
        x = x[:, :, :Ho * k, :]
        H = Ho * k

        def bytes_A(d):
            return 2 * (_blk_bytes((IC, d, kW), itemsize)
                        + _blk_bytes((kW, Wo), itemsize)
                        + _blk_bytes((OC, d, Wo), itemsize))
        TH = Ho
        path = "folded"

    n_t = Ho // TH
    needed = bytes_A(TH) if path == "folded" else bytes_B(TH)
    vmem_limit = int(max(base_vmem_limit, needed + 8 * 1024 * 1024))

    cost = pl.CostEstimate(
        flops=2 * B * IC * Ho * Wo * k * k,
        transcendentals=0,
        bytes_accessed=(B * IC * Ho * k * W + B * OC * Ho * Wo) * itemsize)
    cparams = pltpu.CompilerParams(
        dimension_semantics=("parallel", "parallel"),
        vmem_limit_bytes=vmem_limit)

    if path == "folded":
        x_f = x.reshape(B, IC, Ho, kW)                     # zero-copy reshape
        colpool_f = jnp.tile(colmask, (k, 1)).astype(jnp.float32)   # (k*W, Wo)
        return pl.pallas_call(
            _pool_kernel_folded,
            out_shape=jax.ShapeDtypeStruct((B, OC, Ho, Wo), out_dtype),
            grid=(B, n_t),
            in_specs=[
                pl.BlockSpec((1, IC, TH, kW), lambda b, t: (b, 0, t, 0)),
                pl.BlockSpec((kW, Wo), lambda b, t: (0, 0)),
            ],
            out_specs=pl.BlockSpec((1, OC, TH, Wo), lambda b, t: (b, 0, t, 0)),
            compiler_params=cparams,
            cost_estimate=cost,
        )(x_f, colpool_f)

    # General NCHW path: original x, no slice copy; rows >= Ho*k are simply
    # never covered by any block, columns >= Wo*k are zeroed by colpool.
    rowpool = (jnp.arange(TH * k)[None, :] // k
               == jnp.arange(TH)[:, None]).astype(jnp.float32)      # (TH, TH*k)
    colpool = colmask.astype(jnp.float32)                           # (W, Wo)
    return pl.pallas_call(
        _pool_kernel_nchw,
        out_shape=jax.ShapeDtypeStruct((B, OC, Ho, Wo), out_dtype),
        grid=(B, n_t),
        in_specs=[
            pl.BlockSpec((1, IC, TH * k, W), lambda b, t: (b, 0, t, 0)),
            pl.BlockSpec((TH, TH * k), lambda b, t: (0, 0)),
            pl.BlockSpec((W, Wo), lambda b, t: (0, 0)),
        ],
        out_specs=pl.BlockSpec((1, OC, TH, Wo), lambda b, t: (b, 0, t, 0)),
        compiler_params=cparams,
        cost_estimate=cost,
    )(x, rowpool, colpool)


# ------------------------------ reference ---------------------------------- #

def _reference(x, OC, k):
    w = jnp.ones((OC, x.shape[1], k, k), jnp.float32)
    return lax.conv_general_dilated(
        x, w, window_strides=(k, k), padding="VALID",
        dimension_numbers=("NCHW", "OIHW", "NCHW"),
        precision=lax.Precision.HIGHEST)


if __name__ == "__main__":
    key = jax.random.PRNGKey(0)
    OC, k = 8, 4
    k0, k1, k2 = jax.random.split(key, 3)

    # 1) Canonical small shape (folded path).
    x1 = jax.random.normal(k0, (2, 4, 16, 16), dtype=jnp.float32)
    o1 = jax.block_until_ready(ground_truth_process(x1, OC, k))
    r1 = _reference(x1, OC, k)
    assert o1.shape == (2, OC, 4, 4)
    assert jnp.allclose(o1, r1, atol=1e-3, rtol=1e-3)

    # 2) W not divisible by k: folded path, truncation handled by colpool
    #    zeros (no wrapper slice copy).
    x2 = jax.random.normal(k1, (2, 4, 64, 66), dtype=jnp.float32)
    o2 = jax.block_until_ready(ground_truth_process(x2, OC, k))
    r2 = _reference(x2, OC, k)
    assert o2.shape == r2.shape
    assert jnp.allclose(o2, r2, atol=1e-3, rtol=1e-3)

    # 3) H and W not divisible by k: NCHW path, still no wrapper slice copy.
    x3 = jax.random.normal(k2, (2, 4, 66, 66), dtype=jnp.float32)
    o3 = jax.block_until_ready(ground_truth_process(x3, OC, k))
    r3 = _reference(x3, OC, k)
    assert o3.shape == r3.shape
    assert jnp.allclose(o3, r3, atol=1e-3, rtol=1e-3)

    print("KERNEL_OK")
</pallas_src>

<mosaic_0001>
module attributes {stable_mosaic.version = 11 : i64} {
  func.func @_pool_kernel_folded(%arg0: i32, %arg1: i32, %arg2: memref<1x4x4x64xf32, #tpu.memory_space<vmem>>, %arg3: memref<64x4xf32, #tpu.memory_space<vmem>>, %arg4: memref<1x8x4x4xf32, #tpu.memory_space<vmem>>) attributes {dimension_semantics = [#tpu.dimension_semantics<parallel>, #tpu.dimension_semantics<parallel>], iteration_bounds = array<i64: 2, 1>, scalar_prefetch = 0 : i64, scratch_operands = 0 : i64, tpu.core_type = #tpu.core_type<tc>, window_params = [{transform_indices = @transform_0, window_bounds = array<i64: 1, 4, 4, 64>}, {pipeline_mode = #tpu.pipeline_mode<synchronous>, transform_indices = @transform_1, window_bounds = array<i64: 64, 4>}, {transform_indices = @transform_2, window_bounds = array<i64: 1, 8, 4, 4>}]} {
    %c0 = arith.constant 0 : index
    %c0_0 = arith.constant 0 : index
    %c0_1 = arith.constant 0 : index
    %c0_2 = arith.constant 0 : index
    %0 = vector.load %arg2[%c0, %c0_0, %c0_1, %c0_2] : memref<1x4x4x64xf32, #tpu.memory_space<vmem>>, vector<1x1x4x64xf32>
    %1 = vector.shape_cast %0 : vector<1x1x4x64xf32> to vector<4x64xf32>
    %c0_3 = arith.constant 0 : index
    %c1 = arith.constant 1 : index
    %c0_4 = arith.constant 0 : index
    %c0_5 = arith.constant 0 : index
    %2 = vector.load %arg2[%c0_3, %c1, %c0_4, %c0_5] : memref<1x4x4x64xf32, #tpu.memory_space<vmem>>, vector<1x1x4x64xf32>
    %3 = vector.shape_cast %2 : vector<1x1x4x64xf32> to vector<4x64xf32>
    %4 = arith.addf %1, %3 : vector<4x64xf32>
    %c0_6 = arith.constant 0 : index
    %c2 = arith.constant 2 : index
    %c0_7 = arith.constant 0 : index
    %c0_8 = arith.constant 0 : index
    %5 = vector.load %arg2[%c0_6, %c2, %c0_7, %c0_8] : memref<1x4x4x64xf32, #tpu.memory_space<vmem>>, vector<1x1x4x64xf32>
    %6 = vector.shape_cast %5 : vector<1x1x4x64xf32> to vector<4x64xf32>
    %7 = arith.addf %4, %6 : vector<4x64xf32>
    %c0_9 = arith.constant 0 : index
    %c3 = arith.constant 3 : index
    %c0_10 = arith.constant 0 : index
    %c0_11 = arith.constant 0 : index
    %8 = vector.load %arg2[%c0_9, %c3, %c0_10, %c0_11] : memref<1x4x4x64xf32, #tpu.memory_space<vmem>>, vector<1x1x4x64xf32>
    %9 = vector.shape_cast %8 : vector<1x1x4x64xf32> to vector<4x64xf32>
    %10 = arith.addf %7, %9 : vector<4x64xf32>
    %c0_12 = arith.constant 0 : index
    %c0_13 = arith.constant 0 : index
    %11 = vector.load %arg3[%c0_12, %c0_13] : memref<64x4xf32, #tpu.memory_space<vmem>>, vector<64x4xf32>
    %cst = arith.constant dense<0.000000e+00> : vector<4x4xf32>
    %12 = tpu.matmul %10, %11, %cst {dimension_numbers = #tpu.dot_dimension_numbers<[1], [0], [0], [1], [0, 0, 1, 1], [], []>} : vector<4x64xf32>, vector<64x4xf32>, vector<4x4xf32> -> vector<4x4xf32>
    %c0_14 = arith.constant 0 : index
    %c0_15 = arith.constant 0 : index
    %c0_16 = arith.constant 0 : index
    %c0_17 = arith.constant 0 : index
    %13 = vector.load %arg4[%c0_14, %c0_15, %c0_16, %c0_17] : memref<1x8x4x4xf32, #tpu.memory_space<vmem>>, vector<1x1x4x4xf32>
    %14 = vector.shape_cast %13 : vector<1x1x4x4xf32> to vector<4x4xf32>
    %15 = vector.shape_cast %12 : vector<4x4xf32> to vector<1x1x4x4xf32>
    tpu.vector_store %arg4[%c0_14, %c0_15, %c0_16, %c0_17], %15 {strides = array<i32>} : memref<1x8x4x4xf32, #tpu.memory_space<vmem>>, vector<1x1x4x4xf32>,
    %c0_18 = arith.constant 0 : index
    %c1_19 = arith.constant 1 : index
    %c0_20 = arith.constant 0 : index
    %c0_21 = arith.constant 0 : index
    %16 = vector.load %arg4[%c0_18, %c1_19, %c0_20, %c0_21] : memref<1x8x4x4xf32, #tpu.memory_space<vmem>>, vector<1x1x4x4xf32>
    %17 = vector.shape_cast %16 : vector<1x1x4x4xf32> to vector<4x4xf32>
    %18 = vector.shape_cast %12 : vector<4x4xf32> to vector<1x1x4x4xf32>
    tpu.vector_store %arg4[%c0_18, %c1_19, %c0_20, %c0_21], %18 {strides = array<i32>} : memref<1x8x4x4xf32, #tpu.memory_space<vmem>>, vector<1x1x4x4xf32>,
    %c0_22 = arith.constant 0 : index
    %c2_23 = arith.constant 2 : index
    %c0_24 = arith.constant 0 : index
    %c0_25 = arith.constant 0 : index
    %19 = vector.load %arg4[%c0_22, %c2_23, %c0_24, %c0_25] : memref<1x8x4x4xf32, #tpu.memory_space<vmem>>, vector<1x1x4x4xf32>
    %20 = vector.shape_cast %19 : vector<1x1x4x4xf32> to vector<4x4xf32>
    %21 = vector.shape_cast %12 : vector<4x4xf32> to vector<1x1x4x4xf32>
    tpu.vector_store %arg4[%c0_22, %c2_23, %c0_24, %c0_25], %21 {strides = array<i32>} : memref<1x8x4x4xf32, #tpu.memory_space<vmem>>, vector<1x1x4x4xf32>,
    %c0_26 = arith.constant 0 : index
    %c3_27 = arith.constant 3 : index
    %c0_28 = arith.constant 0 : index
    %c0_29 = arith.constant 0 : index
    %22 = vector.load %arg4[%c0_26, %c3_27, %c0_28, %c0_29] : memref<1x8x4x4xf32, #tpu.memory_space<vmem>>, vector<1x1x4x4xf32>
    %23 = vector.shape_cast %22 : vector<1x1x4x4xf32> to vector<4x4xf32>
    %24 = vector.shape_cast %12 : vector<4x4xf32> to vector<1x1x4x4xf32>
    tpu.vector_store %arg4[%c0_26, %c3_27, %c0_28, %c0_29], %24 {strides = array<i32>} : memref<1x8x4x4xf32, #tpu.memory_space<vmem>>, vector<1x1x4x4xf32>,
    %c0_30 = arith.constant 0 : index
    %c4 = arith.constant 4 : index
    %c0_31 = arith.constant 0 : index
    %c0_32 = arith.constant 0 : index
    %25 = vector.load %arg4[%c0_30, %c4, %c0_31, %c0_32] : memref<1x8x4x4xf32, #tpu.memory_space<vmem>>, vector<1x1x4x4xf32>
    %26 = vector.shape_cast %25 : vector<1x1x4x4xf32> to vector<4x4xf32>
    %27 = vector.shape_cast %12 : vector<4x4xf32> to vector<1x1x4x4xf32>
    tpu.vector_store %arg4[%c0_30, %c4, %c0_31, %c0_32], %27 {strides = array<i32>} : memref<1x8x4x4xf32, #tpu.memory_space<vmem>>, vector<1x1x4x4xf32>,
    %c0_33 = arith.constant 0 : index
    %c5 = arith.constant 5 : index
    %c0_34 = arith.constant 0 : index
    %c0_35 = arith.constant 0 : index
    %28 = vector.load %arg4[%c0_33, %c5, %c0_34, %c0_35] : memref<1x8x4x4xf32, #tpu.memory_space<vmem>>, vector<1x1x4x4xf32>
    %29 = vector.shape_cast %28 : vector<1x1x4x4xf32> to vector<4x4xf32>
    %30 = vector.shape_cast %12 : vector<4x4xf32> to vector<1x1x4x4xf32>
    tpu.vector_store %arg4[%c0_33, %c5, %c0_34, %c0_35], %30 {strides = array<i32>} : memref<1x8x4x4xf32, #tpu.memory_space<vmem>>, vector<1x1x4x4xf32>,
    %c0_36 = arith.constant 0 : index
    %c6 = arith.constant 6 : index
    %c0_37 = arith.constant 0 : index
    %c0_38 = arith.constant 0 : index
    %31 = vector.load %arg4[%c0_36, %c6, %c0_37, %c0_38] : memref<1x8x4x4xf32, #tpu.memory_space<vmem>>, vector<1x1x4x4xf32>
    %32 = vector.shape_cast %31 : vector<1x1x4x4xf32> to vector<4x4xf32>
    %33 = vector.shape_cast %12 : vector<4x4xf32> to vector<1x1x4x4xf32>
    tpu.vector_store %arg4[%c0_36, %c6, %c0_37, %c0_38], %33 {strides = array<i32>} : memref<1x8x4x4xf32, #tpu.memory_space<vmem>>, vector<1x1x4x4xf32>,
    %c0_39 = arith.constant 0 : index
    %c7 = arith.constant 7 : index
    %c0_40 = arith.constant 0 : index
    %c0_41 = arith.constant 0 : index
    %34 = vector.load %arg4[%c0_39, %c7, %c0_40, %c0_41] : memref<1x8x4x4xf32, #tpu.memory_space<vmem>>, vector<1x1x4x4xf32>
    %35 = vector.shape_cast %34 : vector<1x1x4x4xf32> to vector<4x4xf32>
    %36 = vector.shape_cast %12 : vector<4x4xf32> to vector<1x1x4x4xf32>
    tpu.vector_store %arg4[%c0_39, %c7, %c0_40, %c0_41], %36 {strides = array<i32>} : memref<1x8x4x4xf32, #tpu.memory_space<vmem>>, vector<1x1x4x4xf32>,
    return
  }
  func.func @transform_0(%arg0: i32, %arg1: i32) -> (i32, i32, i32, i32) {
    %c0_i32 = arith.constant 0 : i32
    %c0_i32_0 = arith.constant 0 : i32
    %c0_i32_1 = arith.constant 0 : i32
    return %arg0, %c0_i32, %arg1, %c0_i32_0 : i32, i32, i32, i32
  }
  func.func @transform_1(%arg0: i32, %arg1: i32) -> (i32, i32) {
    %c0_i32 = arith.constant 0 : i32
    %c0_i32_0 = arith.constant 0 : i32
    %c0_i32_1 = arith.constant 0 : i32
    return %c0_i32, %c0_i32_0 : i32, i32
  }
  func.func @transform_2(%arg0: i32, %arg1: i32) -> (i32, i32, i32, i32) {
    %c0_i32 = arith.constant 0 : i32
    %c0_i32_0 = arith.constant 0 : i32
    %c0_i32_1 = arith.constant 0 : i32
    return %arg0, %c0_i32, %arg1, %c0_i32_0 : i32, i32, i32, i32
  }
}

</mosaic_0001>

<llo_original>
// kernel: tpu_custom_call.1
$region0: #{tpu_custom_call.1}
  #allocation0 [shape = 'u32[]', space=smem, size = 0x4, offset = 0x4, fixed_abs, tag = 'smem constant byte address 0x4 - core index']
  #allocation1 [shape = 'u32[144,128]{1,0:T(1,128)}', space=vmem, size = 0x12000, scoped, tag = 'internal scratch']
  %s0 = inlined_call_operand.hbm [shape: f32[2,4,4,64], index: 0, kind: input, shape index: {}]
  %s1 = inlined_call_operand.hbm [shape: f32[64,4], index: 1, kind: input, shape index: {}]
  %s2 = inlined_call_operand.hbm [shape: f32[2,8,4,4], index: 2, kind: output, shape index: {}]
  %s3 = sld [smem:[#allocation0]]
  $region49: #{tpu_custom_call.1} parent=0
    _
  %s5 = ssub.s32 1, %s3
  %s6 = scalar_select 0, %s5, %s3
  $region1: #{tpu_custom_call.1} parent=0
    #allocation2 [shape = 'u8[16384]{0}', space=vmem, size = 0x4000, scoped, tag = 'input window, operand 0']
    #allocation3 [shape = 's32[2]{0}', space=sflag, size = 0x8, scoped, tag = 'scoped memory for tpu_custom_call.1']
    #allocation4 [shape = 's32[2]{0}', space=sflag, size = 0x8, scoped, tag = 'scoped memory for tpu_custom_call.1']
    #allocation5 [shape = 'u8[32768]{0}', space=vmem, size = 0x8000, scoped, tag = 'input window, operand 1, single buffered']
    #allocation6 [shape = 's32[1]{0}', space=sflag, size = 0x4, scoped, tag = 'scoped memory for tpu_custom_call.1']
    #allocation7 [shape = 'u8[32768]{0}', space=vmem, size = 0x8000, scoped, tag = 'output window, operand 0']
    %7 = vsyncpa [#allocation3], 0
    %s8 = scalar_lea.sflag [#allocation3], 1
    %9 = vsyncpa %s8, 0
    %10 = vsyncpa [#allocation6], 0
    %11 = vsyncpa [#allocation4], 0
    %s12 = scalar_lea.sflag [#allocation4], 1
    %13 = vsyncpa %s12, 0
    loop: start=0, step=1, limit=4
    $region2: #{tpu_custom_call.1} parent=1 // loop_pre_header
      _
    $region3: #{tpu_custom_call.1} parent=1 // loop_header
      %s15 = sphi 0, %s19
      %p16 = scmp.ge.s32.totalorder %s15, 4
      %s22 = sphi 0, %s34
      %s23 = sphi 0, %s30
      %s24 = sphi 0, %s22
      %s25 = sphi 0, %s23
      %s26 = sphi 0, %s24
      %s27 = sphi 0, %s25
      %s39 = sphi 0, %s41
      %s42 = sphi 0, %s39
      %s43 = sphi 0, %s42
      %s59 = sphi 0, %s43
      %s63 = sphi 0, %s63
      %s65 = sphi 0, %s63
      %s66 = sphi 0, %s65
      %s80 = sphi 0, %s66
      %s88 = sphi 0, %s90
      %s91 = sphi 0, %s88
      %s92 = sphi 0, %s91
      %s108 = sphi 0, %s92
    $region4: #{tpu_custom_call.1} parent=1 // loop_header_branch
      %18 = sbr.rel (%p16) target = $region8
    $region5: #{tpu_custom_call.1} parent=1 // loop_body
      %s20 = ssub.s32 %s15, 1
      %s21 = ssub.s32 %s15, 2
      %s28 = sadd.s32 1, %s23
      %p29 = scmp.ge.s32.totalorder %s28, 1
      %s30 = scalar_select %p29, 0, %s28
      %s31 = sadd.s32 1, %s22
      %s32 = scalar_select %p29, %s31, %s22
      %p33 = scmp.ge.s32.totalorder %s32, 2
      %s34 = scalar_select %p33, 0, %s32
      %s35 = ssub.s32 %s22, %s34
      %s36 = ssub.s32 %s23, %s30
      %s37 = sor.u32 %s35, %s36
      %p38 = scmp.eq.s32.totalorder %s37, 0
      %s40 = sadd.s32 %s39, 1
      %s41 = scalar_select %p38, %s39, %s40
      %p44 = pneg %p38
      %p45 = scmp.eq.s32.totalorder %s15, 1
      %p46 = por %p44, %p45
      %p47 = scmp.ne.s32.totalorder %s39, %s42
      %p48 = scmp.eq.s32.totalorder %s15, 0
      %p49 = por %p47, %p48
      %p50 = scmp.ne.s32.totalorder %s39, %s42
      %p51 = scmp.eq.s32.totalorder %s20, 1
      %p52 = por %p50, %p51
      %p53 = scmp.ne.s32.totalorder %s42, %s43
      %p54 = scmp.eq.s32.totalorder %s20, 0
      %p55 = por %p53, %p54
      %p56 = scmp.ne.s32.totalorder %s42, %s43
      %p57 = scmp.eq.s32.totalorder %s21, 1
      %p58 = por %p56, %p57
      %p60 = scmp.ne.s32.totalorder %s43, %s59
      %p61 = scmp.eq.s32.totalorder %s21, 0
      %p62 = por %p60, %p61
      %s64 = sadd.s32 %s63, 1
      %p67 = scmp.eq.s32.totalorder %s15, 1
      %p68 = scmp.ne.s32.totalorder %s63, %s65
      %p69 = scmp.eq.s32.totalorder %s15, 0
      %p70 = por %p68, %p69
      %p71 = scmp.ne.s32.totalorder %s63, %s65
      %p72 = scmp.eq.s32.totalorder %s20, 1
      %p73 = por %p71, %p72
      %p74 = scmp.ne.s32.totalorder %s65, %s66
      %p75 = scmp.eq.s32.totalorder %s20, 0
      %p76 = por %p74, %p75
      %p77 = scmp.ne.s32.totalorder %s65, %s66
      %p78 = scmp.eq.s32.totalorder %s21, 1
      %p79 = por %p77, %p78
      %p81 = scmp.ne.s32.totalorder %s66, %s80
      %p82 = scmp.eq.s32.totalorder %s21, 0
      %p83 = por %p81, %p82
      %s84 = ssub.s32 %s22, %s34
      %s85 = ssub.s32 %s23, %s30
      %s86 = sor.u32 %s84, %s85
      %p87 = scmp.eq.s32.totalorder %s86, 0
      %s89 = sadd.s32 %s88, 1
      %s90 = scalar_select %p87, %s88, %s89
      %p93 = pneg %p87
      %p94 = scmp.eq.s32.totalorder %s15, 1
      %p95 = por %p93, %p94
      %p96 = scmp.ne.s32.totalorder %s88, %s91
      %p97 = scmp.eq.s32.totalorder %s15, 0
      %p98 = por %p96, %p97
      %p99 = scmp.ne.s32.totalorder %s88, %s91
      %p100 = scmp.eq.s32.totalorder %s20, 1
      %p101 = por %p99, %p100
      %p102 = scmp.ne.s32.totalorder %s91, %s92
      %p103 = scmp.eq.s32.totalorder %s20, 0
      %p104 = por %p102, %p103
      %p105 = scmp.ne.s32.totalorder %s91, %s92
      %p106 = scmp.eq.s32.totalorder %s21, 1
      %p107 = por %p105, %p106
      %p109 = scmp.ne.s32.totalorder %s92, %s108
      %p110 = scmp.eq.s32.totalorder %s21, 0
      %p111 = por %p109, %p110
      %p112 = scmp.le.s32.totalorder 1, %s15
      %p113 = scmp.lt.s32.totalorder %s15, 3
      %p114 = pnand %p112, %p113
      %p115 = pneg %p114
      // Predicated region
      $region9: #{tpu_custom_call.1} parent=5 // pred_check
        _
      $region10: #{tpu_custom_call.1} parent=5 // pred_check_branch
        %117 = sbr.rel (%p114) target = $region12
      $region11: #{tpu_custom_call.1} parent=5 // pred_region
        %s118 = ssub.s32 %s15, 1
        // Predicated region
        $region13: #{tpu_custom_call.1} parent=11 // pred_check
          %p119 = pneg %p76
        $region14: #{tpu_custom_call.1} parent=11 // pred_check_branch
          %121 = sbr.rel (%p119) target = $region16
        $region15: #{tpu_custom_call.1} parent=11 // pred_region
          %s123 = ssub.s32 1024, 1024
          %124 = vsyncadd [#allocation6], %s123
          %s125 = sshll.u32 [#allocation5], 4
          %s126 = int_to_ptr.vmem [resolvable:$true] %s125
          %131 = dma.hbm_to_vmem [thread:$0]  %s1, 1024, %s126, [#allocation6], 128, 128, 8
        $region16: #{tpu_custom_call.1} parent=11 // pred_fallthru
          _
      $region12: #{tpu_custom_call.1} parent=5 // pred_fallthru
        _
      %p132 = scmp.lt.s32.totalorder %s15, 2
      // Predicated region
      $region17: #{tpu_custom_call.1} parent=5 // pred_check
        %p133 = pneg %p132
      $region18: #{tpu_custom_call.1} parent=5 // pred_check_branch
        %135 = sbr.rel (%p133) target = $region20
      $region19: #{tpu_custom_call.1} parent=5 // pred_region
        // Predicated region
        $region21: #{tpu_custom_call.1} parent=19 // pred_check
          %p136 = pneg %p49
        $region22: #{tpu_custom_call.1} parent=19 // pred_check_branch
          %138 = sbr.rel (%p136) target = $region24
        $region23: #{tpu_custom_call.1} parent=19 // pred_region
          %s139 = sand.u32 %s39, 1
          %s140 = scalar_lea.sflag [#allocation3], %s139
          %s141 = sand.u32 %s39, 1
          %s142 = smul.addr %s141, 16
          %s143 = scalar_lea.vmem [#allocation2], %s142
          %s145 = ssub.s32 256, 256
          %146 = vsyncadd %s140, %s145
          %s147 = smul.addr %s22, 4
          %s148 = sadd.s32 %s23, %s147
          %s149 = smul.addr %s148, 64
          %s150 = scalar_lea.hbm %s0, %s149
          %s151 = sshll.u32 %s143, 4
          %s152 = int_to_ptr.vmem [resolvable:$true] %s151
          %157 = dma.hbm_to_vmem [thread:$0]  %s150, 256, %s152, %s140, 64, 64, 4
        $region24: #{tpu_custom_call.1} parent=19 // pred_fallthru
          _
      $region20: #{tpu_custom_call.1} parent=5 // pred_fallthru
        _
      %p158 = scmp.le.s32.totalorder 1, %s15
      %p159 = scmp.lt.s32.totalorder %s15, 3
      %p160 = pnand %p158, %p159
      %p161 = pneg %p160
      // Predicated region
      $region25: #{tpu_custom_call.1} parent=5 // pred_check
        _
      $region26: #{tpu_custom_call.1} parent=5 // pred_check_branch
        %163 = sbr.rel (%p160) target = $region28
      $region27: #{tpu_custom_call.1} parent=5 // pred_region
        %s164 = ssub.s32 %s15, 1
        %s165 = sand.u32 %s42, 1
        %s166 = scalar_lea.sflag [#allocation3], %s165
        %s167 = sand.u32 %s42, 1
        %s168 = smul.addr %s167, 16
        %s169 = scalar_lea.vmem [#allocation2], %s168
        // Predicated region
        $region29: #{tpu_custom_call.1} parent=27 // pred_check
          %p170 = pneg %p55
        $region30: #{tpu_custom_call.1} parent=27 // pred_check_branch
          %172 = sbr.rel (%p170) target = $region32
        $region31: #{tpu_custom_call.1} parent=27 // pred_region
          %173 = dma.done %s166, 256
        $region32: #{tpu_custom_call.1} parent=27 // pred_fallthru
          _
        // Predicated region
        $region33: #{tpu_custom_call.1} parent=27 // pred_check
          %p174 = pneg %p76
        $region34: #{tpu_custom_call.1} parent=27 // pred_check_branch
          %176 = sbr.rel (%p174) target = $region36
        $region35: #{tpu_custom_call.1} parent=27 // pred_region
          %177 = dma.done [#allocation6], 1024
        $region36: #{tpu_custom_call.1} parent=27 // pred_fallthru
          _
        %s178 = sand.u32 %s42, 1
        %s179 = scalar_lea.sflag [#allocation3], %s178
        %s180 = sand.u32 %s42, 1
        %s181 = smul.addr %s180, 16
        %s182 = scalar_lea.vmem [#allocation2], %s181
        %p183 = pneg %p55
        %p184 = pneg %p52
        %p185 = pneg %p76
        %p186 = pneg %p73
        %p187 = pneg %p104
        %p188 = pneg %p101
        %s189 = sand.u32 %s91, 1
        %s190 = scalar_lea.sflag [#allocation4], %s189
        %s191 = sand.u32 %s91, 1
        %s192 = smul.addr %s191, 32
        %s193 = scalar_lea.vmem [#allocation7], %s192
        %v194 = vld [vmem:[%s169] sm:$0xf]
        %s195 = scalar_lea.vmem %s169, 4 [#allocation2]
        %v196 = vld [vmem:[%s195] sm:$0xf]
        %v197 = vadd.f32 %v194, %v196
        %s198 = scalar_lea.vmem %s169, 8 [#allocation2]
        %v199 = vld [vmem:[%s198] sm:$0xf]
        %v200 = vadd.f32 %v197, %v199
        %s201 = scalar_lea.vmem %s169, 12 [#allocation2]
        %v202 = vld [vmem:[%s201] sm:$0xf]
        %v203 = vadd.f32 %v200, %v202
        %v204 = vld [vmem:[#allocation5] sm:$0xff]
        %v205 = vld [vmem:[#allocation5 + $0x8] sm:$0xff]
        %v206 = vld [vmem:[#allocation5 + $0x10] sm:$0xff]
        %v207 = vld [vmem:[#allocation5 + $0x18] sm:$0xff]
        %v208 = vld [vmem:[#allocation5 + $0x20] sm:$0xff]
        %v209 = vld [vmem:[#allocation5 + $0x28] sm:$0xff]
        %v210 = vld [vmem:[#allocation5 + $0x30] sm:$0xff]
        %v211 = vld [vmem:[#allocation5 + $0x38] sm:$0xff]
        %vm212 = vcmask 523264
        %v214 = vsel %vm212, %v203, 0
        %216 = vmatprep.subr.mxu0 0.0
        %217 = vmatpush1.msra.mxu0 %v204
        %218 = vmatprep.subr.mxu0 0.0
        %219 = vmatpush1.msra.mxu0 %v205
        %220 = vmatprep.subr.mxu0 0.0
        %221 = vmatpush1.msra.mxu0 %v206
        %222 = vmatprep.subr.mxu0 0.0
        %223 = vmatpush1.msra.mxu0 %v207
        %224 = vmatprep.subr.mxu0 0.0
        %225 = vmatpush1.msra.mxu0 %v208
        %226 = vmatprep.subr.mxu0 0.0
        %227 = vmatpush1.msra.mxu0 %v209
        %228 = vmatprep.subr.mxu0 0.0
        %229 = vmatpush1.msra.mxu0 %v210
        %230 = vmatprep.subr.mxu0 0.0
        %231 = vmatpush1.msra.mxu0 %v211
        %232 = vmatprep.subr.mxu0 0.0
        %233 = vmatpush1.msra.mxu0 0.0
        %234 = vmatprep.subr.mxu0 0.0
        %235 = vmatpush1.msra.mxu0 0.0
        %236 = vmatprep.subr.mxu0 0.0
        %237 = vmatpush1.msra.mxu0 0.0
        %238 = vmatprep.subr.mxu0 0.0
        %239 = vmatpush1.msra.mxu0 0.0
        %240 = vmatprep.subr.mxu0 0.0
        %241 = vmatpush1.msra.mxu0 0.0
        %242 = vmatprep.subr.mxu0 0.0
        %243 = vmatpush1.msra.mxu0 0.0
        %244 = vmatprep.subr.mxu0 0.0
        %245 = vmatpush1.msra.mxu0 0.0
        %246 = vmatprep.subr.mxu0 0.0
        %247 = vmatpush1.msra.mxu0 0.0
        %248 = vmatprep.subr.mxu0 0.0
        %249 = vmatpush1.msra.mxu0 0.0
        %250 = vmatprep.subr.mxu0 0.0
        %251 = vmatpush1.msra.mxu0 0.0
        %252 = vmatprep.subr.mxu0 0.0
        %253 = vmatpush1.msra.mxu0 0.0
        %254 = vmatprep.subr.mxu0 0.0
        %255 = vmatpush1.msra.mxu0 0.0
        %256 = vmatprep.subr.mxu0 0.0
        %257 = vmatpush1.msra.mxu0 0.0
        %258 = vmatprep.subr.mxu0 0.0
        %259 = vmatpush1.msra.mxu0 0.0
        %260 = vmatprep.subr.mxu0 0.0
        %261 = vmatpush1.msra.mxu0 0.0
        %262 = vmatprep.subr.mxu0 0.0
        %263 = vmatpush1.msra.mxu0 0.0
        %264 = vmatprep.subr.mxu0 0.0
        %265 = vmatpush1.msra.mxu0 0.0
        %266 = vmatprep.subr.mxu0 0.0
        %267 = vmatpush1.msra.mxu0 0.0
        %268 = vmatprep.subr.mxu0 0.0
        %269 = vmatpush1.msra.mxu0 0.0
        %270 = vmatprep.subr.mxu0 0.0
        %271 = vmatpush1.msra.mxu0 0.0
        %272 = vmatprep.subr.mxu0 0.0
        %273 = vmatpush1.msra.mxu0 0.0
        %274 = vmatprep.subr.mxu0 0.0
        %275 = vmatpush1.msra.mxu0 0.0
        %276 = vmatprep.subr.mxu0 0.0
        %277 = vmatpush1.msra.mxu0 0.0
        %278 = vmatprep.subr.mxu0 0.0
        %279 = vmatpush1.msra.mxu0 0.0
        %280 = vmatprep.mubr.f32.mxu0 0.0
        %281 = vmatmul.mubr.f32.gmra.mrb[0].mxu0 %v214
        %v282 = vpop.f32.mrb[0].mxu0
        %v283 = vadd.f32 0.0, %v282
        %v284 = vpop.f32.mrb[0].mxu0
        %285 = vdwg.mxu0
        %vm286 = vcmask 27648
        %287 = vst.msk [vmem:[%s193] sm:$0xf] %vm286, %v283
        %s288 = scalar_lea.vmem %s193, 4 [#allocation7]
        %289 = vst.msk [vmem:[%s288] sm:$0xf] %vm286, %v283
        %s290 = scalar_lea.vmem %s193, 8 [#allocation7]
        %291 = vst.msk [vmem:[%s290] sm:$0xf] %vm286, %v283
        %s292 = scalar_lea.vmem %s193, 12 [#allocation7]
        %293 = vst.msk [vmem:[%s292] sm:$0xf] %vm286, %v283
        %s294 = scalar_lea.vmem %s193, 16 [#allocation7]
        %295 = vst.msk [vmem:[%s294] sm:$0xf] %vm286, %v283
        %s296 = scalar_lea.vmem %s193, 20 [#allocation7]
        %297 = vst.msk [vmem:[%s296] sm:$0xf] %vm286, %v283
        %s298 = scalar_lea.vmem %s193, 24 [#allocation7]
        %299 = vst.msk [vmem:[%s298] sm:$0xf] %vm286, %v283
        %s300 = scalar_lea.vmem %s193, 28 [#allocation7]
        %301 = vst.msk [vmem:[%s300] sm:$0xf] %vm286, %v283
        %s302 = sand.u32 %s91, 1
        %s303 = scalar_lea.sflag [#allocation4], %s302
        %s304 = sand.u32 %s91, 1
        %s305 = smul.addr %s304, 32
        %s306 = scalar_lea.vmem [#allocation7], %s305
        // Predicated region
        $region37: #{tpu_custom_call.1} parent=27 // pred_check
          %p307 = pneg %p101
        $region38: #{tpu_custom_call.1} parent=27 // pred_check_branch
          %309 = sbr.rel (%p307) target = $region40
        $region39: #{tpu_custom_call.1} parent=27 // pred_region
          %s311 = ssub.s32 512, 512
          %312 = vsyncadd %s303, %s311
          %s313 = smul.addr %s24, 8
          %s314 = sadd.s32 %s25, %s313
          %s315 = smul.addr %s314, 64
          %s316 = scalar_lea.hbm %s2, %s315
          %s317 = sshll.u32 %s306, 4
          %s318 = int_to_ptr.vmem [resolvable:$true] %s317
          %323 = dma.vmem_to_hbm [thread:$0]  %s318, 512, %s316, %s303, 64, 64, 4
        $region40: #{tpu_custom_call.1} parent=27 // pred_fallthru
          _
      $region28: #{tpu_custom_call.1} parent=5 // pred_fallthru
        _
      %p324 = scmp.le.s32.totalorder 2, %s15
      // Predicated region
      $region41: #{tpu_custom_call.1} parent=5 // pred_check
        %p325 = pneg %p324
      $region42: #{tpu_custom_call.1} parent=5 // pred_check_branch
        %327 = sbr.rel (%p325) target = $region44
      $region43: #{tpu_custom_call.1} parent=5 // pred_region
        %s328 = ssub.s32 %s15, 2
        // Predicated region
        $region45: #{tpu_custom_call.1} parent=43 // pred_check
          %p329 = pneg %p107
        $region46: #{tpu_custom_call.1} parent=43 // pred_check_branch
          %331 = sbr.rel (%p329) target = $region48
        $region47: #{tpu_custom_call.1} parent=43 // pred_region
          %s332 = sand.u32 %s92, 1
          %s333 = scalar_lea.sflag [#allocation4], %s332
          %s334 = sand.u32 %s92, 1
          %s335 = smul.addr %s334, 32
          %s336 = scalar_lea.vmem [#allocation7], %s335
          %337 = dma.done %s333, 512
        $region48: #{tpu_custom_call.1} parent=43 // pred_fallthru
          _
      $region44: #{tpu_custom_call.1} parent=5 // pred_fallthru
        _
    $region6: #{tpu_custom_call.1} parent=1 // loop_footer
      %s19 = sadd.s32 1, %s15
    $region7: #{tpu_custom_call.1} parent=1 // loop_footer_branch
      %14 = sbr.rel target = $region3
    $region8: #{tpu_custom_call.1} parent=1 // loop_exit
      _
    %338 = vsyncpa [#allocation3], 1
    %s339 = scalar_lea.sflag [#allocation3], 1
    %340 = vsyncpa %s339, 1
    %341 = vsyncpa [#allocation6], 1
    %342 = vsyncpa [#allocation4], 1
    %s343 = scalar_lea.sflag [#allocation4], 1
    %344 = vsyncpa %s343, 1

</llo_original>
